<compile_context>
chip_gen: v7x
topology: tpu7x:2x2x1
jax: 0.10.0
libtpu: 0.0.40
codegen_flags: <defaults>
</compile_context>

<pallas_src>
import jax
import jax.numpy as jnp
from jax import lax
from jax.experimental import pallas as pl
from jax.experimental.pallas import tpu as pltpu


def _user_pred_kernel(packed_ref, wts_ref, bts_ref, a_ts_ref, a_loc_ref,
                      iota_ref, b1_ref, w2_ref, b2_ref, out_ref):
    rows = packed_ref[0]                                            # (2, TILE_B) i32
    ts_row = lax.bitcast_convert_type(rows[0:1, :], jnp.float32)    # (1, TILE_B) f32
    ids_row = rows[1:2, :]                                          # (1, TILE_B) i32

    # Timestamp embedding Linear(1, E) + ReLU, transposed: (E, TILE_B). Pure VPU.
    ts_emb = jnp.maximum(wts_ref[...] * ts_row + bts_ref[...], 0.0)

    # Exact one-hot gather operand; iota is a resident (V_pad, 1) column and the
    # compare produces the matmul dtype directly (single select, no extra pass).
    onehot = (iota_ref[...] == ids_row).astype(a_loc_ref.dtype)     # (V_pad, TILE_B)

    # fc1 with the embedding gather folded in: two independent MXU matmuls
    # (no concat, no serial gather->fc1 dependency).
    h = (jnp.dot(a_ts_ref[...], ts_emb.astype(a_ts_ref.dtype),
                 preferred_element_type=jnp.float32)
         + jnp.dot(a_loc_ref[...], onehot, preferred_element_type=jnp.float32)
         + b1_ref[...])
    h = jnp.maximum(h, 0.0)                                         # (H, TILE_B)

    # fc2 (H -> 1) as VPU multiply + sublane reduction; stays lane-dense.
    out = jnp.sum(h * w2_ref[...], axis=0, keepdims=True) + b2_ref[...]
    out_ref[0] = out.astype(out_ref.dtype)


def _round_up(x, m):
    return ((x + m - 1) // m) * m


def user_prediction_forward(timestamps, location_ids, params, *,
                            tile_b=4096, dot_dtype=jnp.float32):
    """timestamps: (B, 1) float32; location_ids: (B,) int -> (B, 1) float32."""
    B = timestamps.shape[0]
    E = params["w_ts"].shape[1]
    H = params["w1"].shape[1]
    V = params["emb"].shape[0]

    # Lane-aligned tile, capped so there are >= 2 batch tiles when B allows it.
    tile_b = max(128, _round_up(tile_b, 128))
    tile_b = min(tile_b, max(128, _round_up(pl.cdiv(B, 2), 128)))
    n_tiles = pl.cdiv(B, tile_b)
    b_pad = n_tiles * tile_b

    # --- streamed input: ONE packed int32 array, shape (n_tiles, 2, tile_b) ---
    ts_bits = lax.bitcast_convert_type(
        timestamps.reshape(-1).astype(jnp.float32), jnp.int32)
    ids_i32 = location_ids.reshape(-1).astype(jnp.int32)

    def _as_tiles(row):
        if b_pad != B:                        # pad the tail tile only
            row = jnp.pad(row, (0, b_pad - B))
        return row.reshape(n_tiles, 1, tile_b)

    packed = jnp.concatenate([_as_tiles(ts_bits), _as_tiles(ids_i32)], axis=1)

    # --- resident weights (transposed: batch rides the lane axis in-kernel) ---
    v_pad = _round_up(V, 8)
    w1 = params["w1"].astype(jnp.float32)                           # (2E, H)
    emb_relu_t = jnp.maximum(params["emb"].astype(jnp.float32), 0.0).T   # (E, V)
    a_ts = w1[:E, :].T                                              # (H, E)
    a_loc = jnp.dot(w1[E:, :].T, emb_relu_t,
                    precision=lax.Precision.HIGHEST)                # (H, V)
    if v_pad != V:
        a_loc = jnp.pad(a_loc, ((0, 0), (0, v_pad - V)))
    a_ts = a_ts.astype(dot_dtype)
    a_loc = a_loc.astype(dot_dtype)

    wts_col = params["w_ts"].T.astype(jnp.float32)                  # (E, 1)
    bts_col = params["b_ts"].T.astype(jnp.float32)                  # (E, 1)
    b1_col = params["b1"].T.astype(jnp.float32)                     # (H, 1)
    w2_col = params["w2"].astype(jnp.float32)                       # (H, 1)
    b2 = params["b2"].reshape(1, 1).astype(jnp.float32)             # (1, 1)
    iota_col = jnp.arange(v_pad, dtype=jnp.int32).reshape(v_pad, 1)

    stream_in = pl.BlockSpec((1, 2, tile_b), lambda i: (i, 0, 0))
    stream_out = pl.BlockSpec((1, 1, tile_b), lambda i: (i, 0, 0))
    resident = lambda shape: pl.BlockSpec(shape, lambda i: (0,) * len(shape))

    flops = int(2 * b_pad * (H * (E + v_pad) + E + H))
    bytes_accessed = int(12 * b_pad
                         + 4 * (2 * E + H * (E + v_pad + 2) + v_pad + 1))

    out = pl.pallas_call(
        _user_pred_kernel,
        out_shape=jax.ShapeDtypeStruct((n_tiles, 1, tile_b), jnp.float32),
        grid=(n_tiles,),
        in_specs=[
            stream_in,                     # packed [ts bits ; ids], lane-dense
            resident((E, 1)),              # w_ts^T
            resident((E, 1)),              # b_ts^T
            resident((H, E)),              # A_ts  = W1[:E].T
            resident((H, v_pad)),          # A_loc = W1[E:].T @ ReLU(emb)^T
            resident((v_pad, 1)),          # hoisted iota column
            resident((H, 1)),              # b1^T
            resident((H, 1)),              # w2
            resident((1, 1)),              # b2
        ],
        out_specs=stream_out,
        compiler_params=pltpu.CompilerParams(
            dimension_semantics=("parallel",)),
        cost_estimate=pl.CostEstimate(flops=flops, transcendentals=0,
                                      bytes_accessed=bytes_accessed),
    )(packed, wts_col, bts_col, a_ts, a_loc, iota_col, b1_col, w2_col, b2)

    out_flat = out.reshape(-1)
    if b_pad == B:
        return out_flat.reshape(B, 1)
    return out_flat[:B].reshape(B, 1)


def init_params(key, num_locations, embedding_dim=32, hidden_dim=64):
    """Deterministic synthetic init mirroring the PyTorch module's shapes.
    Linear weights are stored transposed as (in_features, out_features)."""
    ks = jax.random.split(key, 7)
    E, H = embedding_dim, hidden_dim

    def uni(k, shape, fan_in):
        bound = 1.0 / jnp.sqrt(jnp.float32(fan_in))
        return jax.random.uniform(k, shape, jnp.float32, -bound, bound)

    return {
        # nn.Linear(1, E)
        "w_ts": uni(ks[0], (1, E), 1),
        "b_ts": uni(ks[1], (1, E), 1),
        # nn.Embedding(num_locations, E)  (PyTorch init ~ N(0, 1))
        "emb": jax.random.normal(ks[2], (num_locations, E), jnp.float32),
        # nn.Linear(2E, H)
        "w1": uni(ks[3], (2 * E, H), 2 * E),
        "b1": uni(ks[4], (1, H), 2 * E),
        # nn.Linear(H, 1)
        "w2": uni(ks[5], (H, 1), H),
        "b2": uni(ks[6], (1, 1), H),
    }


def _reference_forward(timestamps, location_ids, params):
    ts_emb = jnp.maximum(timestamps @ params["w_ts"] + params["b_ts"], 0.0)
    loc_emb = jnp.maximum(params["emb"][location_ids], 0.0)
    x = jnp.concatenate([ts_emb, loc_emb], axis=1)
    h = jnp.maximum(x @ params["w1"] + params["b1"], 0.0)
    return h @ params["w2"] + params["b2"]


if __name__ == "__main__":
    key = jax.random.PRNGKey(0)
    k_p, k_ts, k_loc = jax.random.split(key, 3)

    num_locations = 50
    embedding_dim = 32
    hidden_dim = 64
    batch = 300          # not a multiple of 128 -> exercises multi-tile + padded tail

    params = init_params(k_p, num_locations, embedding_dim, hidden_dim)
    timestamps = jax.random.uniform(k_ts, (batch, 1), jnp.float32)
    location_ids = jax.random.randint(k_loc, (batch,), 0, num_locations, jnp.int32)

    out = user_prediction_forward(timestamps, location_ids, params)
    jax.block_until_ready(out)

    ref = _reference_forward(timestamps, location_ids, params)
    assert out.shape == (batch, 1)
    max_err = float(jnp.max(jnp.abs(out - ref)))
    assert jnp.allclose(out, ref, atol=1e-4, rtol=1e-4), max_err

    print("KERNEL_OK")
</pallas_src>

<mosaic_0001>
module attributes {stable_mosaic.version = 11 : i64} {
  func.func @_user_pred_kernel(%arg0: i32, %arg1: memref<1x2x256xi32, #tpu.memory_space<vmem>>, %arg2: memref<32x1xf32, #tpu.memory_space<vmem>>, %arg3: memref<32x1xf32, #tpu.memory_space<vmem>>, %arg4: memref<64x32xf32, #tpu.memory_space<vmem>>, %arg5: memref<64x56xf32, #tpu.memory_space<vmem>>, %arg6: memref<56x1xi32, #tpu.memory_space<vmem>>, %arg7: memref<64x1xf32, #tpu.memory_space<vmem>>, %arg8: memref<64x1xf32, #tpu.memory_space<vmem>>, %arg9: memref<1x1xf32, #tpu.memory_space<vmem>>, %arg10: memref<1x1x256xf32, #tpu.memory_space<vmem>>) attributes {dimension_semantics = [#tpu.dimension_semantics<parallel>], iteration_bounds = array<i64: 2>, scalar_prefetch = 0 : i64, scratch_operands = 0 : i64, tpu.core_type = #tpu.core_type<tc>, window_params = [{transform_indices = @transform_0, window_bounds = array<i64: 1, 2, 256>}, {pipeline_mode = #tpu.pipeline_mode<synchronous>, transform_indices = @transform_1, window_bounds = array<i64: 32, 1>}, {pipeline_mode = #tpu.pipeline_mode<synchronous>, transform_indices = @transform_2, window_bounds = array<i64: 32, 1>}, {pipeline_mode = #tpu.pipeline_mode<synchronous>, transform_indices = @transform_3, window_bounds = array<i64: 64, 32>}, {pipeline_mode = #tpu.pipeline_mode<synchronous>, transform_indices = @transform_4, window_bounds = array<i64: 64, 56>}, {pipeline_mode = #tpu.pipeline_mode<synchronous>, transform_indices = @transform_5, window_bounds = array<i64: 56, 1>}, {pipeline_mode = #tpu.pipeline_mode<synchronous>, transform_indices = @transform_6, window_bounds = array<i64: 64, 1>}, {pipeline_mode = #tpu.pipeline_mode<synchronous>, transform_indices = @transform_7, window_bounds = array<i64: 64, 1>}, {pipeline_mode = #tpu.pipeline_mode<synchronous>, transform_indices = @transform_8, window_bounds = array<i64: 1, 1>}, {transform_indices = @transform_9, window_bounds = array<i64: 1, 1, 256>}]} {
    %c0 = arith.constant 0 : index
    %c0_0 = arith.constant 0 : index
    %c0_1 = arith.constant 0 : index
    %0 = vector.load %arg1[%c0, %c0_0, %c0_1] : memref<1x2x256xi32, #tpu.memory_space<vmem>>, vector<1x2x256xi32>
    %1 = vector.shape_cast %0 : vector<1x2x256xi32> to vector<2x256xi32>
    %2 = vector.extract_strided_slice %1 {offsets = [0, 0], sizes = [1, 256], strides = [1, 1]} : vector<2x256xi32> to vector<1x256xi32>
    %3 = tpu.bitcast %2 : vector<1x256xi32> -> vector<1x256xf32>
    %4 = vector.extract_strided_slice %1 {offsets = [1, 0], sizes = [1, 256], strides = [1, 1]} : vector<2x256xi32> to vector<1x256xi32>
    %c0_2 = arith.constant 0 : index
    %c0_3 = arith.constant 0 : index
    %5 = vector.load %arg2[%c0_2, %c0_3] : memref<32x1xf32, #tpu.memory_space<vmem>>, vector<32x1xf32>
    %6 = vector.broadcast %5 : vector<32x1xf32> to vector<32x256xf32>
    %7 = vector.broadcast %3 : vector<1x256xf32> to vector<32x256xf32>
    %8 = arith.mulf %6, %7 : vector<32x256xf32>
    %c0_4 = arith.constant 0 : index
    %c0_5 = arith.constant 0 : index
    %9 = vector.load %arg3[%c0_4, %c0_5] : memref<32x1xf32, #tpu.memory_space<vmem>>, vector<32x1xf32>
    %10 = vector.broadcast %9 : vector<32x1xf32> to vector<32x256xf32>
    %11 = arith.addf %8, %10 : vector<32x256xf32>
    %cst = arith.constant 0.000000e+00 : f32
    %12 = vector.broadcast %cst : f32 to vector<32x256xf32>
    %13 = arith.maximumf %11, %12 : vector<32x256xf32>
    %c0_6 = arith.constant 0 : index
    %c0_7 = arith.constant 0 : index
    %14 = vector.load %arg6[%c0_6, %c0_7] : memref<56x1xi32, #tpu.memory_space<vmem>>, vector<56x1xi32>
    %15 = vector.broadcast %14 : vector<56x1xi32> to vector<56x256xi32>
    %16 = vector.broadcast %4 : vector<1x256xi32> to vector<56x256xi32>
    %17 = arith.cmpi eq, %15, %16 : vector<56x256xi32>
    %18 = arith.extui %17 : vector<56x256xi1> to vector<56x256xi32>
    %19 = arith.sitofp %18 : vector<56x256xi32> to vector<56x256xf32>
    %c0_8 = arith.constant 0 : index
    %c0_9 = arith.constant 0 : index
    %20 = vector.load %arg4[%c0_8, %c0_9] : memref<64x32xf32, #tpu.memory_space<vmem>>, vector<64x32xf32>
    %cst_10 = arith.constant dense<0.000000e+00> : vector<64x256xf32>
    %21 = tpu.matmul %20, %13, %cst_10 {dimension_numbers = #tpu.dot_dimension_numbers<[1], [0], [0], [1], [0, 0, 1, 1], [], []>} : vector<64x32xf32>, vector<32x256xf32>, vector<64x256xf32> -> vector<64x256xf32>
    %c0_11 = arith.constant 0 : index
    %c0_12 = arith.constant 0 : index
    %22 = vector.load %arg5[%c0_11, %c0_12] : memref<64x56xf32, #tpu.memory_space<vmem>>, vector<64x56xf32>
    %cst_13 = arith.constant dense<0.000000e+00> : vector<64x256xf32>
    %23 = tpu.matmul %22, %19, %cst_13 {dimension_numbers = #tpu.dot_dimension_numbers<[1], [0], [0], [1], [0, 0, 1, 1], [], []>} : vector<64x56xf32>, vector<56x256xf32>, vector<64x256xf32> -> vector<64x256xf32>
    %24 = arith.addf %21, %23 : vector<64x256xf32>
    %c0_14 = arith.constant 0 : index
    %c0_15 = arith.constant 0 : index
    %25 = vector.load %arg7[%c0_14, %c0_15] : memref<64x1xf32, #tpu.memory_space<vmem>>, vector<64x1xf32>
    %26 = vector.broadcast %25 : vector<64x1xf32> to vector<64x256xf32>
    %27 = arith.addf %24, %26 : vector<64x256xf32>
    %cst_16 = arith.constant 0.000000e+00 : f32
    %28 = vector.broadcast %cst_16 : f32 to vector<64x256xf32>
    %29 = arith.maximumf %27, %28 : vector<64x256xf32>
    %c0_17 = arith.constant 0 : index
    %c0_18 = arith.constant 0 : index
    %30 = vector.load %arg8[%c0_17, %c0_18] : memref<64x1xf32, #tpu.memory_space<vmem>>, vector<64x1xf32>
    %31 = vector.broadcast %30 : vector<64x1xf32> to vector<64x256xf32>
    %32 = arith.mulf %29, %31 : vector<64x256xf32>
    %cst_19 = arith.constant dense<0.000000e+00> : vector<256xf32>
    %33 = vector.multi_reduction <add>, %32, %cst_19 [0] : vector<64x256xf32> to vector<256xf32>
    %34 = vector.shape_cast %33 : vector<256xf32> to vector<1x256xf32>
    %c0_20 = arith.constant 0 : index
    %c0_21 = arith.constant 0 : index
    %35 = vector.load %arg9[%c0_20, %c0_21] : memref<1x1xf32, #tpu.memory_space<vmem>>, vector<1x1xf32>
    %36 = vector.broadcast %35 : vector<1x1xf32> to vector<1x256xf32>
    %37 = arith.addf %34, %36 : vector<1x256xf32>
    %c0_22 = arith.constant 0 : index
    %c0_23 = arith.constant 0 : index
    %c0_24 = arith.constant 0 : index
    %38 = vector.load %arg10[%c0_22, %c0_23, %c0_24] : memref<1x1x256xf32, #tpu.memory_space<vmem>>, vector<1x1x256xf32>
    %39 = vector.shape_cast %38 : vector<1x1x256xf32> to vector<1x256xf32>
    %40 = vector.shape_cast %37 : vector<1x256xf32> to vector<1x1x256xf32>
    tpu.vector_store %arg10[%c0_22, %c0_23, %c0_24], %40 {strides = array<i32>} : memref<1x1x256xf32, #tpu.memory_space<vmem>>, vector<1x1x256xf32>,
    return
  }
  func.func @transform_0(%arg0: i32) -> (i32, i32, i32) {
    %c0_i32 = arith.constant 0 : i32
    %c0_i32_0 = arith.constant 0 : i32
    %c0_i32_1 = arith.constant 0 : i32
    return %arg0, %c0_i32, %c0_i32_0 : i32, i32, i32
  }
  func.func @transform_1(%arg0: i32) -> (i32, i32) {
    %c0_i32 = arith.constant 0 : i32
    %c0_i32_0 = arith.constant 0 : i32
    %c0_i32_1 = arith.constant 0 : i32
    return %c0_i32, %c0_i32_0 : i32, i32
  }
  func.func @transform_2(%arg0: i32) -> (i32, i32) {
    %c0_i32 = arith.constant 0 : i32
    %c0_i32_0 = arith.constant 0 : i32
    %c0_i32_1 = arith.constant 0 : i32
    return %c0_i32, %c0_i32_0 : i32, i32
  }
  func.func @transform_3(%arg0: i32) -> (i32, i32) {
    %c0_i32 = arith.constant 0 : i32
    %c0_i32_0 = arith.constant 0 : i32
    %c0_i32_1 = arith.constant 0 : i32
    return %c0_i32, %c0_i32_0 : i32, i32
  }
  func.func @transform_4(%arg0: i32) -> (i32, i32) {
    %c0_i32 = arith.constant 0 : i32
    %c0_i32_0 = arith.constant 0 : i32
    %c0_i32_1 = arith.constant 0 : i32
    return %c0_i32, %c0_i32_0 : i32, i32
  }
  func.func @transform_5(%arg0: i32) -> (i32, i32) {
    %c0_i32 = arith.constant 0 : i32
    %c0_i32_0 = arith.constant 0 : i32
    %c0_i32_1 = arith.constant 0 : i32
    return %c0_i32, %c0_i32_0 : i32, i32
  }
  func.func @transform_6(%arg0: i32) -> (i32, i32) {
    %c0_i32 = arith.constant 0 : i32
    %c0_i32_0 = arith.constant 0 : i32
    %c0_i32_1 = arith.constant 0 : i32
    return %c0_i32, %c0_i32_0 : i32, i32
  }
  func.func @transform_7(%arg0: i32) -> (i32, i32) {
    %c0_i32 = arith.constant 0 : i32
    %c0_i32_0 = arith.constant 0 : i32
    %c0_i32_1 = arith.constant 0 : i32
    return %c0_i32, %c0_i32_0 : i32, i32
  }
  func.func @transform_8(%arg0: i32) -> (i32, i32) {
    %c0_i32 = arith.constant 0 : i32
    %c0_i32_0 = arith.constant 0 : i32
    %c0_i32_1 = arith.constant 0 : i32
    return %c0_i32, %c0_i32_0 : i32, i32
  }
  func.func @transform_9(%arg0: i32) -> (i32, i32, i32) {
    %c0_i32 = arith.constant 0 : i32
    %c0_i32_0 = arith.constant 0 : i32
    %c0_i32_1 = arith.constant 0 : i32
    return %arg0, %c0_i32, %c0_i32_0 : i32, i32, i32
  }
}

</mosaic_0001>

<llo_original>
// kernel: tpu_custom_call.1
$region0: #{tpu_custom_call.1}
  #allocation0 [shape = 'u32[]', space=smem, size = 0x4, offset = 0x4, fixed_abs, tag = 'smem constant byte address 0x4 - core index']
  #allocation1 [shape = 'u32[144,128]{1,0:T(1,128)}', space=vmem, size = 0x12000, scoped, tag = 'internal scratch']
  #allocation2 [shape = 'f32[1,1]{1,0:T(1,128)S(1)}', space=vmem, size = 0x200, scoped, tag = 'scoped memory for tpu_custom_call.1']
  %s0 = inlined_call_operand.vmem [shape: s32[2,2,256], index: 0, kind: input, shape index: {}]
  %s1 = inlined_call_operand.vmem [shape: f32[32,1], index: 1, kind: input, shape index: {}]
  %s2 = inlined_call_operand.vmem [shape: f32[32,1], index: 2, kind: input, shape index: {}]
  %s3 = inlined_call_operand.vmem [shape: f32[64,32], index: 3, kind: input, shape index: {}]
  %s4 = inlined_call_operand.vmem [shape: f32[64,56], index: 4, kind: input, shape index: {}]
  %s5 = inlined_call_operand.vmem [shape: s32[56,1], index: 5, kind: input, shape index: {}]
  %s6 = inlined_call_operand.vmem [shape: f32[64,1], index: 6, kind: input, shape index: {}]
  %s7 = inlined_call_operand.vmem [shape: f32[64,1], index: 7, kind: input, shape index: {}]
  %s8 = inlined_call_operand.<no memory space> [shape: f32[1,1], index: 8, kind: input, shape index: {}]
  %s9 = inlined_call_operand.hbm [shape: f32[2,1,256], index: 9, kind: output, shape index: {}]
  %s10 = sld [smem:[#allocation0]]
  $region69: #{tpu_custom_call.1} parent=0
    _
  %s12 = ssub.s32 1, %s10
  %s13 = scalar_select 0, %s12, %s10
  %v14 = vstv %s8
  %15 = vst [vmem:[#allocation2] sm:$0x1] %v14
  $region1: #{tpu_custom_call.1} parent=0
    #allocation3 [shape = 'u8[2048]{0}', space=vmem, size = 0x800, scoped, tag = 'output window, operand 0']
    #allocation4 [shape = 's32[2]{0}', space=sflag, size = 0x8, scoped, tag = 'scoped memory for tpu_custom_call.1']
    %16 = vsyncpa [#allocation4], 0
    %s17 = scalar_lea.sflag [#allocation4], 1
    %18 = vsyncpa %s17, 0
    loop: start=0, step=1, limit=4
    $region2: #{tpu_custom_call.1} parent=1 // loop_pre_header
      _
    $region3: #{tpu_custom_call.1} parent=1 // loop_header
      %s20 = sphi 0, %s24
      %p21 = scmp.ge.s32.totalorder %s20, 4
      %s30 = sphi 0, %s32
      %s33 = sphi 0, %s30
      %s34 = sphi 0, %s33
      %s50 = sphi 0, %s34
      %s54 = sphi 0, %s54
      %s56 = sphi 0, %s54
      %s57 = sphi 0, %s56
      %s71 = sphi 0, %s57
      %s75 = sphi 0, %s75
      %s77 = sphi 0, %s75
      %s78 = sphi 0, %s77
      %s92 = sphi 0, %s78
      %s96 = sphi 0, %s96
      %s98 = sphi 0, %s96
      %s99 = sphi 0, %s98
      %s113 = sphi 0, %s99
      %s117 = sphi 0, %s117
      %s119 = sphi 0, %s117
      %s120 = sphi 0, %s119
      %s134 = sphi 0, %s120
      %s138 = sphi 0, %s138
      %s140 = sphi 0, %s138
      %s141 = sphi 0, %s140
      %s155 = sphi 0, %s141
      %s159 = sphi 0, %s159
      %s161 = sphi 0, %s159
      %s162 = sphi 0, %s161
      %s176 = sphi 0, %s162
      %s180 = sphi 0, %s180
      %s182 = sphi 0, %s180
      %s183 = sphi 0, %s182
      %s197 = sphi 0, %s183
      %s201 = sphi 0, %s201
      %s203 = sphi 0, %s201
      %s204 = sphi 0, %s203
      %s218 = sphi 0, %s204
      %s224 = sphi 0, %s226
      %s227 = sphi 0, %s224
      %s228 = sphi 0, %s227
      %s244 = sphi 0, %s228
    $region4: #{tpu_custom_call.1} parent=1 // loop_header_branch
      %23 = sbr.rel (%p21) target = $region8
    $region5: #{tpu_custom_call.1} parent=1 // loop_body
      %s25 = ssub.s32 %s20, 1
      %s26 = ssub.s32 %s20, 2
      %s27 = sadd.s32 %s20, 1
      %s28 = ssub.s32 %s20, %s27
      %p29 = scmp.eq.s32.totalorder %s28, 0
      %s31 = sadd.s32 %s30, 1
      %s32 = scalar_select %p29, %s30, %s31
      %p35 = pneg %p29
      %p36 = scmp.eq.s32.totalorder %s20, 1
      %p37 = por %p35, %p36
      %p38 = scmp.ne.s32.totalorder %s30, %s33
      %p39 = scmp.eq.s32.totalorder %s20, 0
      %p40 = por %p38, %p39
      %p41 = scmp.ne.s32.totalorder %s30, %s33
      %p42 = scmp.eq.s32.totalorder %s25, 1
      %p43 = por %p41, %p42
      %p44 = scmp.ne.s32.totalorder %s33, %s34
      %p45 = scmp.eq.s32.totalorder %s25, 0
      %p46 = por %p44, %p45
      %p47 = scmp.ne.s32.totalorder %s33, %s34
      %p48 = scmp.eq.s32.totalorder %s26, 1
      %p49 = por %p47, %p48
      %p51 = scmp.ne.s32.totalorder %s34, %s50
      %p52 = scmp.eq.s32.totalorder %s26, 0
      %p53 = por %p51, %p52
      %s55 = sadd.s32 %s54, 1
      %p58 = scmp.eq.s32.totalorder %s20, 1
      %p59 = scmp.ne.s32.totalorder %s54, %s56
      %p60 = scmp.eq.s32.totalorder %s20, 0
      %p61 = por %p59, %p60
      %p62 = scmp.ne.s32.totalorder %s54, %s56
      %p63 = scmp.eq.s32.totalorder %s25, 1
      %p64 = por %p62, %p63
      %p65 = scmp.ne.s32.totalorder %s56, %s57
      %p66 = scmp.eq.s32.totalorder %s25, 0
      %p67 = por %p65, %p66
      %p68 = scmp.ne.s32.totalorder %s56, %s57
      %p69 = scmp.eq.s32.totalorder %s26, 1
      %p70 = por %p68, %p69
      %p72 = scmp.ne.s32.totalorder %s57, %s71
      %p73 = scmp.eq.s32.totalorder %s26, 0
      %p74 = por %p72, %p73
      %s76 = sadd.s32 %s75, 1
      %p79 = scmp.eq.s32.totalorder %s20, 1
      %p80 = scmp.ne.s32.totalorder %s75, %s77
      %p81 = scmp.eq.s32.totalorder %s20, 0
      %p82 = por %p80, %p81
      %p83 = scmp.ne.s32.totalorder %s75, %s77
      %p84 = scmp.eq.s32.totalorder %s25, 1
      %p85 = por %p83, %p84
      %p86 = scmp.ne.s32.totalorder %s77, %s78
      %p87 = scmp.eq.s32.totalorder %s25, 0
      %p88 = por %p86, %p87
      %p89 = scmp.ne.s32.totalorder %s77, %s78
      %p90 = scmp.eq.s32.totalorder %s26, 1
      %p91 = por %p89, %p90
      %p93 = scmp.ne.s32.totalorder %s78, %s92
      %p94 = scmp.eq.s32.totalorder %s26, 0
      %p95 = por %p93, %p94
      %s97 = sadd.s32 %s96, 1
      %p100 = scmp.eq.s32.totalorder %s20, 1
      %p101 = scmp.ne.s32.totalorder %s96, %s98
      %p102 = scmp.eq.s32.totalorder %s20, 0
      %p103 = por %p101, %p102
      %p104 = scmp.ne.s32.totalorder %s96, %s98
      %p105 = scmp.eq.s32.totalorder %s25, 1
      %p106 = por %p104, %p105
      %p107 = scmp.ne.s32.totalorder %s98, %s99
      %p108 = scmp.eq.s32.totalorder %s25, 0
      %p109 = por %p107, %p108
      %p110 = scmp.ne.s32.totalorder %s98, %s99
      %p111 = scmp.eq.s32.totalorder %s26, 1
      %p112 = por %p110, %p111
      %p114 = scmp.ne.s32.totalorder %s99, %s113
      %p115 = scmp.eq.s32.totalorder %s26, 0
      %p116 = por %p114, %p115
      %s118 = sadd.s32 %s117, 1
      %p121 = scmp.eq.s32.totalorder %s20, 1
      %p122 = scmp.ne.s32.totalorder %s117, %s119
      %p123 = scmp.eq.s32.totalorder %s20, 0
      %p124 = por %p122, %p123
      %p125 = scmp.ne.s32.totalorder %s117, %s119
      %p126 = scmp.eq.s32.totalorder %s25, 1
      %p127 = por %p125, %p126
      %p128 = scmp.ne.s32.totalorder %s119, %s120
      %p129 = scmp.eq.s32.totalorder %s25, 0
      %p130 = por %p128, %p129
      %p131 = scmp.ne.s32.totalorder %s119, %s120
      %p132 = scmp.eq.s32.totalorder %s26, 1
      %p133 = por %p131, %p132
      %p135 = scmp.ne.s32.totalorder %s120, %s134
      %p136 = scmp.eq.s32.totalorder %s26, 0
      %p137 = por %p135, %p136
      %s139 = sadd.s32 %s138, 1
      %p142 = scmp.eq.s32.totalorder %s20, 1
      %p143 = scmp.ne.s32.totalorder %s138, %s140
      %p144 = scmp.eq.s32.totalorder %s20, 0
      %p145 = por %p143, %p144
      %p146 = scmp.ne.s32.totalorder %s138, %s140
      %p147 = scmp.eq.s32.totalorder %s25, 1
      %p148 = por %p146, %p147
      %p149 = scmp.ne.s32.totalorder %s140, %s141
      %p150 = scmp.eq.s32.totalorder %s25, 0
      %p151 = por %p149, %p150
      %p152 = scmp.ne.s32.totalorder %s140, %s141
      %p153 = scmp.eq.s32.totalorder %s26, 1
      %p154 = por %p152, %p153
      %p156 = scmp.ne.s32.totalorder %s141, %s155
      %p157 = scmp.eq.s32.totalorder %s26, 0
      %p158 = por %p156, %p157
      %s160 = sadd.s32 %s159, 1
      %p163 = scmp.eq.s32.totalorder %s20, 1
      %p164 = scmp.ne.s32.totalorder %s159, %s161
      %p165 = scmp.eq.s32.totalorder %s20, 0
      %p166 = por %p164, %p165
      %p167 = scmp.ne.s32.totalorder %s159, %s161
      %p168 = scmp.eq.s32.totalorder %s25, 1
      %p169 = por %p167, %p168
      %p170 = scmp.ne.s32.totalorder %s161, %s162
      %p171 = scmp.eq.s32.totalorder %s25, 0
      %p172 = por %p170, %p171
      %p173 = scmp.ne.s32.totalorder %s161, %s162
      %p174 = scmp.eq.s32.totalorder %s26, 1
      %p175 = por %p173, %p174
      %p177 = scmp.ne.s32.totalorder %s162, %s176
      %p178 = scmp.eq.s32.totalorder %s26, 0
      %p179 = por %p177, %p178
      %s181 = sadd.s32 %s180, 1
      %p184 = scmp.eq.s32.totalorder %s20, 1
      %p185 = scmp.ne.s32.totalorder %s180, %s182
      %p186 = scmp.eq.s32.totalorder %s20, 0
      %p187 = por %p185, %p186
      %p188 = scmp.ne.s32.totalorder %s180, %s182
      %p189 = scmp.eq.s32.totalorder %s25, 1
      %p190 = por %p188, %p189
      %p191 = scmp.ne.s32.totalorder %s182, %s183
      %p192 = scmp.eq.s32.totalorder %s25, 0
      %p193 = por %p191, %p192
      %p194 = scmp.ne.s32.totalorder %s182, %s183
      %p195 = scmp.eq.s32.totalorder %s26, 1
      %p196 = por %p194, %p195
      %p198 = scmp.ne.s32.totalorder %s183, %s197
      %p199 = scmp.eq.s32.totalorder %s26, 0
      %p200 = por %p198, %p199
      %s202 = sadd.s32 %s201, 1
      %p205 = scmp.eq.s32.totalorder %s20, 1
      %p206 = scmp.ne.s32.totalorder %s201, %s203
      %p207 = scmp.eq.s32.totalorder %s20, 0
      %p208 = por %p206, %p207
      %p209 = scmp.ne.s32.totalorder %s201, %s203
      %p210 = scmp.eq.s32.totalorder %s25, 1
      %p211 = por %p209, %p210
      %p212 = scmp.ne.s32.totalorder %s203, %s204
      %p213 = scmp.eq.s32.totalorder %s25, 0
      %p214 = por %p212, %p213
      %p215 = scmp.ne.s32.totalorder %s203, %s204
      %p216 = scmp.eq.s32.totalorder %s26, 1
      %p217 = por %p215, %p216
      %p219 = scmp.ne.s32.totalorder %s204, %s218
      %p220 = scmp.eq.s32.totalorder %s26, 0
      %p221 = por %p219, %p220
      %s222 = ssub.s32 %s20, %s27
      %p223 = scmp.eq.s32.totalorder %s222, 0
      %s225 = sadd.s32 %s224, 1
      %s226 = scalar_select %p223, %s224, %s225
      %p229 = pneg %p223
      %p230 = scmp.eq.s32.totalorder %s20, 1
      %p231 = por %p229, %p230
      %p232 = scmp.ne.s32.totalorder %s224, %s227
      %p233 = scmp.eq.s32.totalorder %s20, 0
      %p234 = por %p232, %p233
      %p235 = scmp.ne.s32.totalorder %s224, %s227
      %p236 = scmp.eq.s32.totalorder %s25, 1
      %p237 = por %p235, %p236
      %p238 = scmp.ne.s32.totalorder %s227, %s228
      %p239 = scmp.eq.s32.totalorder %s25, 0
      %p240 = por %p238, %p239
      %p241 = scmp.ne.s32.totalorder %s227, %s228
      %p242 = scmp.eq.s32.totalorder %s26, 1
      %p243 = por %p241, %p242
      %p245 = scmp.ne.s32.totalorder %s228, %s244
      %p246 = scmp.eq.s32.totalorder %s26, 0
      %p247 = por %p245, %p246
      %p248 = scmp.le.s32.totalorder 1, %s20
      %p249 = scmp.lt.s32.totalorder %s20, 3
      %p250 = pnand %p248, %p249
      %p251 = pneg %p250
      // Predicated region
      $region9: #{tpu_custom_call.1} parent=5 // pred_check
        _
      $region10: #{tpu_custom_call.1} parent=5 // pred_check_branch
        %253 = sbr.rel (%p250) target = $region12
      $region11: #{tpu_custom_call.1} parent=5 // pred_region
        %s254 = ssub.s32 %s20, 1
        // Predicated region
        $region13: #{tpu_custom_call.1} parent=11 // pred_check
          %p255 = pneg %p67
        $region14: #{tpu_custom_call.1} parent=11 // pred_check_branch
          %257 = sbr.rel (%p255) target = $region16
        $region15: #{tpu_custom_call.1} parent=11 // pred_region
          _
        $region16: #{tpu_custom_call.1} parent=11 // pred_fallthru
          _
        // Predicated region
        $region17: #{tpu_custom_call.1} parent=11 // pred_check
          %p258 = pneg %p88
        $region18: #{tpu_custom_call.1} parent=11 // pred_check_branch
          %260 = sbr.rel (%p258) target = $region20
        $region19: #{tpu_custom_call.1} parent=11 // pred_region
          _
        $region20: #{tpu_custom_call.1} parent=11 // pred_fallthru
          _
        // Predicated region
        $region21: #{tpu_custom_call.1} parent=11 // pred_check
          %p261 = pneg %p109
        $region22: #{tpu_custom_call.1} parent=11 // pred_check_branch
          %263 = sbr.rel (%p261) target = $region24
        $region23: #{tpu_custom_call.1} parent=11 // pred_region
          _
        $region24: #{tpu_custom_call.1} parent=11 // pred_fallthru
          _
        // Predicated region
        $region25: #{tpu_custom_call.1} parent=11 // pred_check
          %p264 = pneg %p130
        $region26: #{tpu_custom_call.1} parent=11 // pred_check_branch
          %266 = sbr.rel (%p264) target = $region28
        $region27: #{tpu_custom_call.1} parent=11 // pred_region
          _
        $region28: #{tpu_custom_call.1} parent=11 // pred_fallthru
          _
        // Predicated region
        $region29: #{tpu_custom_call.1} parent=11 // pred_check
          %p267 = pneg %p151
        $region30: #{tpu_custom_call.1} parent=11 // pred_check_branch
          %269 = sbr.rel (%p267) target = $region32
        $region31: #{tpu_custom_call.1} parent=11 // pred_region
          _
        $region32: #{tpu_custom_call.1} parent=11 // pred_fallthru
          _
        // Predicated region
        $region33: #{tpu_custom_call.1} parent=11 // pred_check
          %p270 = pneg %p172
        $region34: #{tpu_custom_call.1} parent=11 // pred_check_branch
          %272 = sbr.rel (%p270) target = $region36
        $region35: #{tpu_custom_call.1} parent=11 // pred_region
          _
        $region36: #{tpu_custom_call.1} parent=11 // pred_fallthru
          _
        // Predicated region
        $region37: #{tpu_custom_call.1} parent=11 // pred_check
          %p273 = pneg %p193
        $region38: #{tpu_custom_call.1} parent=11 // pred_check_branch
          %275 = sbr.rel (%p273) target = $region40
        $region39: #{tpu_custom_call.1} parent=11 // pred_region
          _
        $region40: #{tpu_custom_call.1} parent=11 // pred_fallthru
          _
        // Predicated region
        $region41: #{tpu_custom_call.1} parent=11 // pred_check
          %p276 = pneg %p214
        $region42: #{tpu_custom_call.1} parent=11 // pred_check_branch
          %278 = sbr.rel (%p276) target = $region44
        $region43: #{tpu_custom_call.1} parent=11 // pred_region
          _
        $region44: #{tpu_custom_call.1} parent=11 // pred_fallthru
          _
      $region12: #{tpu_custom_call.1} parent=5 // pred_fallthru
        _
      %p279 = scmp.lt.s32.totalorder %s20, 2
      // Predicated region
      $region45: #{tpu_custom_call.1} parent=5 // pred_check
        %p280 = pneg %p279
      $region46: #{tpu_custom_call.1} parent=5 // pred_check_branch
        %282 = sbr.rel (%p280) target = $region48
      $region47: #{tpu_custom_call.1} parent=5 // pred_region
        // Predicated region
        $region49: #{tpu_custom_call.1} parent=47 // pred_check
          %p283 = pneg %p40
        $region50: #{tpu_custom_call.1} parent=47 // pred_check_branch
          %285 = sbr.rel (%p283) target = $region52
        $region51: #{tpu_custom_call.1} parent=47 // pred_region
          %p286 = scmp.lt.s32.totalorder %s20, 1
          %s287 = scalar_select %p286, %s20, 1
          %s288 = smul.addr %s287, 2
          %s289 = smul.addr %s288, 2
          %s290 = scalar_lea.vmem %s0, %s289
        $region52: #{tpu_custom_call.1} parent=47 // pred_fallthru
          _
      $region48: #{tpu_custom_call.1} parent=5 // pred_fallthru
        _
      %p291 = scmp.le.s32.totalorder 1, %s20
      %p292 = scmp.lt.s32.totalorder %s20, 3
      %p293 = pnand %p291, %p292
      %p294 = pneg %p293
      // Predicated region
      $region53: #{tpu_custom_call.1} parent=5 // pred_check
        _
      $region54: #{tpu_custom_call.1} parent=5 // pred_check_branch
        %296 = sbr.rel (%p293) target = $region56
      $region55: #{tpu_custom_call.1} parent=5 // pred_region
        %s297 = ssub.s32 %s20, 1
        %p298 = scmp.lt.s32.totalorder %s25, 1
        %s299 = scalar_select %p298, %s25, 1
        %s300 = smul.addr %s299, 2
        %s301 = smul.addr %s300, 2
        %s302 = scalar_lea.vmem %s0, %s301
        %p303 = pneg %p46
        %p304 = pneg %p43
        %p305 = pneg %p67
        %p306 = pneg %p64
        %p307 = pneg %p88
        %p308 = pneg %p85
        %p309 = pneg %p109
        %p310 = pneg %p106
        %p311 = pneg %p130
        %p312 = pneg %p127
        %p313 = pneg %p151
        %p314 = pneg %p148
        %p315 = pneg %p172
        %p316 = pneg %p169
        %p317 = pneg %p193
        %p318 = pneg %p190
        %p319 = pneg %p214
        %p320 = pneg %p211
        %p321 = pneg %p240
        %p322 = pneg %p237
        %s323 = sand.u32 %s227, 1
        %s324 = scalar_lea.sflag [#allocation4], %s323
        %s325 = sand.u32 %s227, 1
        %s326 = smul.addr %s325, 2
        %s327 = scalar_lea.vmem [#allocation3], %s326
        %p328 = scmp.lt.s32.totalorder %s25, 1
        %s329 = scalar_select %p328, %s25, 1
        %s330 = smul.addr %s329, 2
        %s331 = smul.addr %s330, 2
        %s332 = scalar_lea.vmem %s0, %s331
        %v333 = vld [vmem:[%s332] sm:$0xf]
        %v334 = vlaneseq
        %v335 = vshrl.u32 %v334, 7
        %v336 = vsub.s32 0, %v335
        %v337 = vrot.slane %v333, %v336
        %v338 = vlaneseq
        %v339 = vshrl.u32 %v338, 7
        %v340 = vsub.s32 2, %v339
        %v341 = vrot.slane %v333, %v340
        %v344 = vld [vmem:[%s1] sm:$0xff]
        %v345 = vld [vmem:[%s1 + $0x8] sm:$0xff]
        %v346 = vld [vmem:[%s1 + $0x10] sm:$0xff]
        %v347 = vld [vmem:[%s1 + $0x18] sm:$0xff]
        %349 = vset.pattern.permute.xlu0 0
        %350 = vperm.xlu0 %349, %v344
        %v351 = vpop.permute.xlu0 %350
        %354 = vset.pattern.permute.xlu0 0
        %355 = vperm.xlu0 %354, %v345
        %v356 = vpop.permute.xlu0 %355
        %359 = vset.pattern.permute.xlu0 0
        %360 = vperm.xlu0 %359, %v346
        %v361 = vpop.permute.xlu0 %360
        %364 = vset.pattern.permute.xlu0 0
        %365 = vperm.xlu0 %364, %v347
        %v366 = vpop.permute.xlu0 %365
        %v368 = vlaneseq
        %v369 = vshrl.u32 %v368, 7
        %v370 = vsub.s32 0, %v369
        %v371 = vrot.slane %v337, %v370
        %v372 = vlaneseq
        %v373 = vshrl.u32 %v372, 7
        %v374 = vsub.s32 0, %v373
        %v375 = vrot.slane %v341, %v374
        %v376 = vmul.f32 %v351, %v371
        %v377 = vmul.f32 %v351, %v375
        %v378 = vmul.f32 %v356, %v371
        %v379 = vmul.f32 %v356, %v375
        %v380 = vmul.f32 %v361, %v371
        %v381 = vmul.f32 %v361, %v375
        %v382 = vmul.f32 %v366, %v371
        %v383 = vmul.f32 %v366, %v375
        %v384 = vld [vmem:[%s2] sm:$0xff]
        %v385 = vld [vmem:[%s2 + $0x8] sm:$0xff]
        %v386 = vld [vmem:[%s2 + $0x10] sm:$0xff]
        %v387 = vld [vmem:[%s2 + $0x18] sm:$0xff]
        %389 = vset.pattern.permute.xlu0 0
        %390 = vperm.xlu0 %389, %v384
        %v391 = vpop.permute.xlu0 %390
        %394 = vset.pattern.permute.xlu0 0
        %395 = vperm.xlu0 %394, %v385
        %v396 = vpop.permute.xlu0 %395
        %399 = vset.pattern.permute.xlu0 0
        %400 = vperm.xlu0 %399, %v386
        %v401 = vpop.permute.xlu0 %400
        %404 = vset.pattern.permute.xlu0 0
        %405 = vperm.xlu0 %404, %v387
        %v406 = vpop.permute.xlu0 %405
        %v408 = vadd.f32 %v376, %v391
        %v409 = vadd.f32 %v377, %v391
        %v410 = vadd.f32 %v378, %v396
        %v411 = vadd.f32 %v379, %v396
        %v412 = vadd.f32 %v380, %v401
        %v413 = vadd.f32 %v381, %v401
        %v414 = vadd.f32 %v382, %v406
        %v415 = vadd.f32 %v383, %v406
        %v416 = vmax.f32 %v408, 0.0
        %v417 = vmax.f32 %v409, 0.0
        %v418 = vmax.f32 %v410, 0.0
        %v419 = vmax.f32 %v411, 0.0
        %v420 = vmax.f32 %v412, 0.0
        %v421 = vmax.f32 %v413, 0.0
        %v422 = vmax.f32 %v414, 0.0
        %v423 = vmax.f32 %v415, 0.0
        %v424 = vld [vmem:[%s5] sm:$0xff]
        %v425 = vld [vmem:[%s5 + $0x8] sm:$0xff]
        %v426 = vld [vmem:[%s5 + $0x10] sm:$0xff]
        %v427 = vld [vmem:[%s5 + $0x18] sm:$0xff]
        %v428 = vld [vmem:[%s5 + $0x20] sm:$0xff]
        %v429 = vld [vmem:[%s5 + $0x28] sm:$0xff]
        %v430 = vld [vmem:[%s5 + $0x30] sm:$0xff]
        %431 = vset.pattern.permute.xlu0 0
        %432 = vperm.xlu0 %431, %v424
        %v433 = vpop.permute.xlu0 %432
        %434 = vset.pattern.permute.xlu0 0
        %435 = vperm.xlu0 %434, %v425
        %v436 = vpop.permute.xlu0 %435
        %437 = vset.pattern.permute.xlu0 0
        %438 = vperm.xlu0 %437, %v426
        %v439 = vpop.permute.xlu0 %438
        %440 = vset.pattern.permute.xlu0 0
        %441 = vperm.xlu0 %440, %v427
        %v442 = vpop.permute.xlu0 %441
        %443 = vset.pattern.permute.xlu0 0
        %444 = vperm.xlu0 %443, %v428
        %v445 = vpop.permute.xlu0 %444
        %446 = vset.pattern.permute.xlu0 0
        %447 = vperm.xlu0 %446, %v429
        %v448 = vpop.permute.xlu0 %447
        %449 = vset.pattern.permute.xlu0 0
        %450 = vperm.xlu0 %449, %v430
        %v451 = vpop.permute.xlu0 %450
        %v452 = vlaneseq
        %v453 = vshrl.u32 %v452, 7
        %v454 = vsub.s32 1, %v453
        %v455 = vrot.slane %v333, %v454
        %v456 = vlaneseq
        %v457 = vshrl.u32 %v456, 7
        %v458 = vsub.s32 3, %v457
        %v459 = vrot.slane %v333, %v458
        %v460 = vlaneseq
        %v461 = vshrl.u32 %v460, 7
        %v462 = vsub.s32 1, %v461
        %v463 = vrot.slane %v455, %v462
        %v464 = vlaneseq
        %v465 = vshrl.u32 %v464, 7
        %v466 = vsub.s32 1, %v465
        %v467 = vrot.slane %v459, %v466
        %vm468 = vcmp.eq.s32.totalorder %v433, %v463
        %vm469 = vcmp.eq.s32.totalorder %v433, %v467
        %vm470 = vcmp.eq.s32.totalorder %v436, %v463
        %vm471 = vcmp.eq.s32.totalorder %v436, %v467
        %vm472 = vcmp.eq.s32.totalorder %v439, %v463
        %vm473 = vcmp.eq.s32.totalorder %v439, %v467
        %vm474 = vcmp.eq.s32.totalorder %v442, %v463
        %vm475 = vcmp.eq.s32.totalorder %v442, %v467
        %vm476 = vcmp.eq.s32.totalorder %v445, %v463
        %vm477 = vcmp.eq.s32.totalorder %v445, %v467
        %vm478 = vcmp.eq.s32.totalorder %v448, %v463
        %vm479 = vcmp.eq.s32.totalorder %v448, %v467
        %vm480 = vcmp.eq.s32.totalorder %v451, %v463
        %vm481 = vcmp.eq.s32.totalorder %v451, %v467
        %v482 = vsel %vm468, 1, 0
        %v483 = vsel %vm469, 1, 0
        %v484 = vsel %vm470, 1, 0
        %v485 = vsel %vm471, 1, 0
        %v486 = vsel %vm472, 1, 0
        %v487 = vsel %vm473, 1, 0
        %v488 = vsel %vm474, 1, 0
        %v489 = vsel %vm475, 1, 0
        %v490 = vsel %vm476, 1, 0
        %v491 = vsel %vm477, 1, 0
        %v492 = vsel %vm478, 1, 0
        %v493 = vsel %vm479, 1, 0
        %v494 = vsel %vm480, 1, 0
        %v495 = vsel %vm481, 1, 0
        %v496 = vcvt.s32.f32 %v482
        %v497 = vcvt.s32.f32 %v483
        %v498 = vcvt.s32.f32 %v484
        %v499 = vcvt.s32.f32 %v485
        %v500 = vcvt.s32.f32 %v486
        %v501 = vcvt.s32.f32 %v487
        %v502 = vcvt.s32.f32 %v488
        %v503 = vcvt.s32.f32 %v489
        %v504 = vcvt.s32.f32 %v490
        %v505 = vcvt.s32.f32 %v491
        %v506 = vcvt.s32.f32 %v492
        %v507 = vcvt.s32.f32 %v493
        %v508 = vcvt.s32.f32 %v494
        %v509 = vcvt.s32.f32 %v495
        %v510 = vld [vmem:[%s3] sm:$0xff]
        %v511 = vld [vmem:[%s3 + $0x8] sm:$0xff]
        %v512 = vld [vmem:[%s3 + $0x10] sm:$0xff]
        %v513 = vld [vmem:[%s3 + $0x18] sm:$0xff]
        %v514 = vld [vmem:[%s3 + $0x20] sm:$0xff]
        %v515 = vld [vmem:[%s3 + $0x28] sm:$0xff]
        %v516 = vld [vmem:[%s3 + $0x30] sm:$0xff]
        %v517 = vld [vmem:[%s3 + $0x38] sm:$0xff]
        %v518 = vld [vmem:[%s4] sm:$0xff]
        %v519 = vld [vmem:[%s4 + $0x8] sm:$0xff]
        %v520 = vld [vmem:[%s4 + $0x10] sm:$0xff]
        %v521 = vld [vmem:[%s4 + $0x18] sm:$0xff]
        %v522 = vld [vmem:[%s4 + $0x20] sm:$0xff]
        %v523 = vld [vmem:[%s4 + $0x28] sm:$0xff]
        %v524 = vld [vmem:[%s4 + $0x30] sm:$0xff]
        %v525 = vld [vmem:[%s4 + $0x38] sm:$0xff]
        %vm526 = vcmask 457728
        %v528 = vsel %vm526, %v518, 0
        %v531 = vsel %vm526, %v519, 0
        %v534 = vsel %vm526, %v520, 0
        %v537 = vsel %vm526, %v521, 0
        %v540 = vsel %vm526, %v522, 0
        %v543 = vsel %vm526, %v523, 0
        %v546 = vsel %vm526, %v524, 0
        %v549 = vsel %vm526, %v525, 0
        %551 = vmatprep.subr.mxu0 %v497
        %552 = vmatpush1.msra.mxu0 %v496
        %553 = vmatprep.subr.mxu0 %v499
        %554 = vmatpush1.msra.mxu0 %v498
        %555 = vmatprep.subr.mxu0 %v501
        %556 = vmatpush1.msra.mxu0 %v500
        %557 = vmatprep.subr.mxu0 %v503
        %558 = vmatpush1.msra.mxu0 %v502
        %559 = vmatprep.subr.mxu0 %v505
        %560 = vmatpush1.msra.mxu0 %v504
        %561 = vmatprep.subr.mxu0 %v507
        %562 = vmatpush1.msra.mxu0 %v506
        %563 = vmatprep.subr.mxu0 %v509
        %564 = vmatpush1.msra.mxu0 %v508
        %565 = vmatprep.subr.mxu0 0.0
        %566 = vmatpush1.msra.mxu0 0.0
        %567 = vmatprep.subr.mxu0 0.0
        %568 = vmatpush1.msra.mxu0 0.0
        %569 = vmatprep.subr.mxu0 0.0
        %570 = vmatpush1.msra.mxu0 0.0
        %571 = vmatprep.subr.mxu0 0.0
        %572 = vmatpush1.msra.mxu0 0.0
        %573 = vmatprep.subr.mxu0 0.0
        %574 = vmatpush1.msra.mxu0 0.0
        %575 = vmatprep.subr.mxu0 0.0
        %576 = vmatpush1.msra.mxu0 0.0
        %577 = vmatprep.subr.mxu0 0.0
        %578 = vmatpush1.msra.mxu0 0.0
        %579 = vmatprep.subr.mxu0 0.0
        %580 = vmatpush1.msra.mxu0 0.0
        %581 = vmatprep.subr.mxu0 0.0
        %582 = vmatpush1.msra.mxu0 0.0
        %583 = vmatprep.subr.mxu0 0.0
        %584 = vmatpush1.msra.mxu0 0.0
        %585 = vmatprep.subr.mxu0 0.0
        %586 = vmatpush1.msra.mxu0 0.0
        %587 = vmatprep.subr.mxu0 0.0
        %588 = vmatpush1.msra.mxu0 0.0
        %589 = vmatprep.subr.mxu0 0.0
        %590 = vmatpush1.msra.mxu0 0.0
        %591 = vmatprep.subr.mxu0 0.0
        %592 = vmatpush1.msra.mxu0 0.0
        %593 = vmatprep.subr.mxu0 0.0
        %594 = vmatpush1.msra.mxu0 0.0
        %595 = vmatprep.subr.mxu0 0.0
        %596 = vmatpush1.msra.mxu0 0.0
        %597 = vmatprep.subr.mxu0 0.0
        %598 = vmatpush1.msra.mxu0 0.0
        %599 = vmatprep.subr.mxu0 0.0
        %600 = vmatpush1.msra.mxu0 0.0
        %601 = vmatprep.subr.mxu0 0.0
        %602 = vmatpush1.msra.mxu0 0.0
        %603 = vmatprep.subr.mxu0 0.0
        %604 = vmatpush1.msra.mxu0 0.0
        %605 = vmatprep.subr.mxu0 0.0
        %606 = vmatpush1.msra.mxu0 0.0
        %607 = vmatprep.subr.mxu0 0.0
        %608 = vmatpush1.msra.mxu0 0.0
        %609 = vmatprep.subr.mxu0 0.0
        %610 = vmatpush1.msra.mxu0 0.0
        %611 = vmatprep.subr.mxu0 0.0
        %612 = vmatpush1.msra.mxu0 0.0
        %613 = vmatprep.subr.mxu0 0.0
        %614 = vmatpush1.msra.mxu0 0.0
        %615 = vmatprep.mubr.f32.mxu0 0.0
        %616 = vmatmul.mubr.f32.gmra.mrb[0].mxu0 %v528
        %v617 = vpop.f32.mrb[0].mxu0
        %v618 = vadd.f32 0.0, %v617
        %v619 = vpop.f32.mrb[0].mxu0
        %v620 = vadd.f32 0.0, %v619
        %621 = vmatprep.mubr.f32.mxu0 0.0
        %622 = vmatmul.mubr.f32.gmra.mrb[0].mxu0 %v531
        %v623 = vpop.f32.mrb[0].mxu0
        %v624 = vadd.f32 0.0, %v623
        %v625 = vpop.f32.mrb[0].mxu0
        %v626 = vadd.f32 0.0, %v625
        %627 = vmatprep.mubr.f32.mxu0 0.0
        %628 = vmatmul.mubr.f32.gmra.mrb[0].mxu0 %v534
        %v629 = vpop.f32.mrb[0].mxu0
        %v630 = vadd.f32 0.0, %v629
        %v631 = vpop.f32.mrb[0].mxu0
        %v632 = vadd.f32 0.0, %v631
        %633 = vmatprep.mubr.f32.mxu0 0.0
        %634 = vmatmul.mubr.f32.gmra.mrb[0].mxu0 %v537
        %v635 = vpop.f32.mrb[0].mxu0
        %v636 = vadd.f32 0.0, %v635
        %v637 = vpop.f32.mrb[0].mxu0
        %v638 = vadd.f32 0.0, %v637
        %639 = vmatprep.mubr.f32.mxu0 0.0
        %640 = vmatmul.mubr.f32.gmra.mrb[0].mxu0 %v540
        %v641 = vpop.f32.mrb[0].mxu0
        %v642 = vadd.f32 0.0, %v641
        %v643 = vpop.f32.mrb[0].mxu0
        %v644 = vadd.f32 0.0, %v643
        %645 = vmatprep.mubr.f32.mxu0 0.0
        %646 = vmatmul.mubr.f32.gmra.mrb[0].mxu0 %v543
        %v647 = vpop.f32.mrb[0].mxu0
        %v648 = vadd.f32 0.0, %v647
        %v649 = vpop.f32.mrb[0].mxu0
        %v650 = vadd.f32 0.0, %v649
        %651 = vmatprep.mubr.f32.mxu0 0.0
        %652 = vmatmul.mubr.f32.gmra.mrb[0].mxu0 %v546
        %v653 = vpop.f32.mrb[0].mxu0
        %v654 = vadd.f32 0.0, %v653
        %v655 = vpop.f32.mrb[0].mxu0
        %v656 = vadd.f32 0.0, %v655
        %657 = vmatprep.mubr.f32.mxu0 0.0
        %658 = vmatmul.mubr.f32.gmra.mrb[0].mxu0 %v549
        %v659 = vpop.f32.mrb[0].mxu0
        %v660 = vadd.f32 0.0, %v659
        %v661 = vpop.f32.mrb[0].mxu0
        %v662 = vadd.f32 0.0, %v661
        %663 = vdwg.mxu0
        %vm664 = vcmask 261120
        %v666 = vsel %vm664, %v510, 0
        %v669 = vsel %vm664, %v511, 0
        %v672 = vsel %vm664, %v512, 0
        %v675 = vsel %vm664, %v513, 0
        %v678 = vsel %vm664, %v514, 0
        %v681 = vsel %vm664, %v515, 0
        %v684 = vsel %vm664, %v516, 0
        %v687 = vsel %vm664, %v517, 0
        %689 = vmatprep.subr.mxu0 %v417
        %690 = vmatpush1.msra.mxu0 %v416
        %691 = vmatprep.subr.mxu0 %v419
        %692 = vmatpush1.msra.mxu0 %v418
        %693 = vmatprep.subr.mxu0 %v421
        %694 = vmatpush1.msra.mxu0 %v420
        %695 = vmatprep.subr.mxu0 %v423
        %696 = vmatpush1.msra.mxu0 %v422
        %697 = vmatprep.subr.mxu0 0.0
        %698 = vmatpush1.msra.mxu0 0.0
        %699 = vmatprep.subr.mxu0 0.0
        %700 = vmatpush1.msra.mxu0 0.0
        %701 = vmatprep.subr.mxu0 0.0
        %702 = vmatpush1.msra.mxu0 0.0
        %703 = vmatprep.subr.mxu0 0.0
        %704 = vmatpush1.msra.mxu0 0.0
        %705 = vmatprep.subr.mxu0 0.0
        %706 = vmatpush1.msra.mxu0 0.0
        %707 = vmatprep.subr.mxu0 0.0
        %708 = vmatpush1.msra.mxu0 0.0
        %709 = vmatprep.subr.mxu0 0.0
        %710 = vmatpush1.msra.mxu0 0.0
        %711 = vmatprep.subr.mxu0 0.0
        %712 = vmatpush1.msra.mxu0 0.0
        %713 = vmatprep.subr.mxu0 0.0
        %714 = vmatpush1.msra.mxu0 0.0
        %715 = vmatprep.subr.mxu0 0.0
        %716 = vmatpush1.msra.mxu0 0.0
        %717 = vmatprep.subr.mxu0 0.0
        %718 = vmatpush1.msra.mxu0 0.0
        %719 = vmatprep.subr.mxu0 0.0
        %720 = vmatpush1.msra.mxu0 0.0
        %721 = vmatprep.subr.mxu0 0.0
        %722 = vmatpush1.msra.mxu0 0.0
        %723 = vmatprep.subr.mxu0 0.0
        %724 = vmatpush1.msra.mxu0 0.0
        %725 = vmatprep.subr.mxu0 0.0
        %726 = vmatpush1.msra.mxu0 0.0
        %727 = vmatprep.subr.mxu0 0.0
        %728 = vmatpush1.msra.mxu0 0.0
        %729 = vmatprep.subr.mxu0 0.0
        %730 = vmatpush1.msra.mxu0 0.0
        %731 = vmatprep.subr.mxu0 0.0
        %732 = vmatpush1.msra.mxu0 0.0
        %733 = vmatprep.subr.mxu0 0.0
        %734 = vmatpush1.msra.mxu0 0.0
        %735 = vmatprep.subr.mxu0 0.0
        %736 = vmatpush1.msra.mxu0 0.0
        %737 = vmatprep.subr.mxu0 0.0
        %738 = vmatpush1.msra.mxu0 0.0
        %739 = vmatprep.subr.mxu0 0.0
        %740 = vmatpush1.msra.mxu0 0.0
        %741 = vmatprep.subr.mxu0 0.0
        %742 = vmatpush1.msra.mxu0 0.0
        %743 = vmatprep.subr.mxu0 0.0
        %744 = vmatpush1.msra.mxu0 0.0
        %745 = vmatprep.subr.mxu0 0.0
        %746 = vmatpush1.msra.mxu0 0.0
        %747 = vmatprep.subr.mxu0 0.0
        %748 = vmatpush1.msra.mxu0 0.0
        %749 = vmatprep.subr.mxu0 0.0
        %750 = vmatpush1.msra.mxu0 0.0
        %751 = vmatprep.subr.mxu0 0.0
        %752 = vmatpush1.msra.mxu0 0.0
        %753 = vmatprep.mubr.f32.mxu0 0.0
        %754 = vmatmul.mubr.f32.gmra.mrb[0].mxu0 %v666
        %v755 = vpop.f32.mrb[0].mxu0
        %v756 = vadd.f32 %v618, %v755
        %v757 = vpop.f32.mrb[0].mxu0
        %v758 = vadd.f32 %v620, %v757
        %759 = vmatprep.mubr.f32.mxu0 0.0
        %760 = vmatmul.mubr.f32.gmra.mrb[0].mxu0 %v669
        %v761 = vpop.f32.mrb[0].mxu0
        %v762 = vadd.f32 %v624, %v761
        %v763 = vpop.f32.mrb[0].mxu0
        %v764 = vadd.f32 %v626, %v763
        %765 = vmatprep.mubr.f32.mxu0 0.0
        %766 = vmatmul.mubr.f32.gmra.mrb[0].mxu0 %v672
        %v767 = vpop.f32.mrb[0].mxu0
        %v768 = vadd.f32 %v630, %v767
        %v769 = vpop.f32.mrb[0].mxu0
        %v770 = vadd.f32 %v632, %v769
        %771 = vmatprep.mubr.f32.mxu0 0.0
        %772 = vmatmul.mubr.f32.gmra.mrb[0].mxu0 %v675
        %v773 = vpop.f32.mrb[0].mxu0
        %v774 = vadd.f32 %v636, %v773
        %v775 = vpop.f32.mrb[0].mxu0
        %v776 = vadd.f32 %v638, %v775
        %777 = vmatprep.mubr.f32.mxu0 0.0
        %778 = vmatmul.mubr.f32.gmra.mrb[0].mxu0 %v678
        %v779 = vpop.f32.mrb[0].mxu0
        %v780 = vadd.f32 %v642, %v779
        %v781 = vpop.f32.mrb[0].mxu0
        %v782 = vadd.f32 %v644, %v781
        %783 = vmatprep.mubr.f32.mxu0 0.0
        %784 = vmatmul.mubr.f32.gmra.mrb[0].mxu0 %v681
        %v785 = vpop.f32.mrb[0].mxu0
        %v786 = vadd.f32 %v648, %v785
        %v787 = vpop.f32.mrb[0].mxu0
        %v788 = vadd.f32 %v650, %v787
        %789 = vmatprep.mubr.f32.mxu0 0.0
        %790 = vmatmul.mubr.f32.gmra.mrb[0].mxu0 %v684
        %v791 = vpop.f32.mrb[0].mxu0
        %v792 = vadd.f32 %v654, %v791
        %v793 = vpop.f32.mrb[0].mxu0
        %v794 = vadd.f32 %v656, %v793
        %795 = vmatprep.mubr.f32.mxu0 0.0
        %796 = vmatmul.mubr.f32.gmra.mrb[0].mxu0 %v687
        %v797 = vpop.f32.mrb[0].mxu0
        %v798 = vadd.f32 %v660, %v797
        %v799 = vpop.f32.mrb[0].mxu0
        %v800 = vadd.f32 %v662, %v799
        %801 = vdwg.mxu0
        %v802 = vld [vmem:[%s6] sm:$0xff]
        %v803 = vld [vmem:[%s6 + $0x8] sm:$0xff]
        %v804 = vld [vmem:[%s6 + $0x10] sm:$0xff]
        %v805 = vld [vmem:[%s6 + $0x18] sm:$0xff]
        %v806 = vld [vmem:[%s6 + $0x20] sm:$0xff]
        %v807 = vld [vmem:[%s6 + $0x28] sm:$0xff]
        %v808 = vld [vmem:[%s6 + $0x30] sm:$0xff]
        %v809 = vld [vmem:[%s6 + $0x38] sm:$0xff]
        %811 = vset.pattern.permute.xlu0 0
        %812 = vperm.xlu0 %811, %v802
        %v813 = vpop.permute.xlu0 %812
        %816 = vset.pattern.permute.xlu0 0
        %817 = vperm.xlu0 %816, %v803
        %v818 = vpop.permute.xlu0 %817
        %821 = vset.pattern.permute.xlu0 0
        %822 = vperm.xlu0 %821, %v804
        %v823 = vpop.permute.xlu0 %822
        %826 = vset.pattern.permute.xlu0 0
        %827 = vperm.xlu0 %826, %v805
        %v828 = vpop.permute.xlu0 %827
        %831 = vset.pattern.permute.xlu0 0
        %832 = vperm.xlu0 %831, %v806
        %v833 = vpop.permute.xlu0 %832
        %836 = vset.pattern.permute.xlu0 0
        %837 = vperm.xlu0 %836, %v807
        %v838 = vpop.permute.xlu0 %837
        %841 = vset.pattern.permute.xlu0 0
        %842 = vperm.xlu0 %841, %v808
        %v843 = vpop.permute.xlu0 %842
        %846 = vset.pattern.permute.xlu0 0
        %847 = vperm.xlu0 %846, %v809
        %v848 = vpop.permute.xlu0 %847
        %v850 = vadd.f32 %v756, %v813
        %v851 = vadd.f32 %v758, %v813
        %v852 = vadd.f32 %v762, %v818
        %v853 = vadd.f32 %v764, %v818
        %v854 = vadd.f32 %v768, %v823
        %v855 = vadd.f32 %v770, %v823
        %v856 = vadd.f32 %v774, %v828
        %v857 = vadd.f32 %v776, %v828
        %v858 = vadd.f32 %v780, %v833
        %v859 = vadd.f32 %v782, %v833
        %v860 = vadd.f32 %v786, %v838
        %v861 = vadd.f32 %v788, %v838
        %v862 = vadd.f32 %v792, %v843
        %v863 = vadd.f32 %v794, %v843
        %v864 = vadd.f32 %v798, %v848
        %v865 = vadd.f32 %v800, %v848
        %v866 = vmax.f32 %v850, 0.0
        %v867 = vmax.f32 %v851, 0.0
        %v868 = vmax.f32 %v852, 0.0
        %v869 = vmax.f32 %v853, 0.0
        %v870 = vmax.f32 %v854, 0.0
        %v871 = vmax.f32 %v855, 0.0
        %v872 = vmax.f32 %v856, 0.0
        %v873 = vmax.f32 %v857, 0.0
        %v874 = vmax.f32 %v858, 0.0
        %v875 = vmax.f32 %v859, 0.0
        %v876 = vmax.f32 %v860, 0.0
        %v877 = vmax.f32 %v861, 0.0
        %v878 = vmax.f32 %v862, 0.0
        %v879 = vmax.f32 %v863, 0.0
        %v880 = vmax.f32 %v864, 0.0
        %v881 = vmax.f32 %v865, 0.0
        %v882 = vld [vmem:[%s7] sm:$0xff]
        %v883 = vld [vmem:[%s7 + $0x8] sm:$0xff]
        %v884 = vld [vmem:[%s7 + $0x10] sm:$0xff]
        %v885 = vld [vmem:[%s7 + $0x18] sm:$0xff]
        %v886 = vld [vmem:[%s7 + $0x20] sm:$0xff]
        %v887 = vld [vmem:[%s7 + $0x28] sm:$0xff]
        %v888 = vld [vmem:[%s7 + $0x30] sm:$0xff]
        %v889 = vld [vmem:[%s7 + $0x38] sm:$0xff]
        %891 = vset.pattern.permute.xlu0 0
        %892 = vperm.xlu0 %891, %v882
        %v893 = vpop.permute.xlu0 %892
        %896 = vset.pattern.permute.xlu0 0
        %897 = vperm.xlu0 %896, %v883
        %v898 = vpop.permute.xlu0 %897
        %901 = vset.pattern.permute.xlu0 0
        %902 = vperm.xlu0 %901, %v884
        %v903 = vpop.permute.xlu0 %902
        %906 = vset.pattern.permute.xlu0 0
        %907 = vperm.xlu0 %906, %v885
        %v908 = vpop.permute.xlu0 %907
        %911 = vset.pattern.permute.xlu0 0
        %912 = vperm.xlu0 %911, %v886
        %v913 = vpop.permute.xlu0 %912
        %916 = vset.pattern.permute.xlu0 0
        %917 = vperm.xlu0 %916, %v887
        %v918 = vpop.permute.xlu0 %917
        %921 = vset.pattern.permute.xlu0 0
        %922 = vperm.xlu0 %921, %v888
        %v923 = vpop.permute.xlu0 %922
        %926 = vset.pattern.permute.xlu0 0
        %927 = vperm.xlu0 %926, %v889
        %v928 = vpop.permute.xlu0 %927
        %v930 = vmul.f32 %v866, %v893
        %v931 = vmul.f32 %v867, %v893
        %v932 = vmul.f32 %v868, %v898
        %v933 = vmul.f32 %v869, %v898
        %v934 = vmul.f32 %v870, %v903
        %v935 = vmul.f32 %v871, %v903
        %v936 = vmul.f32 %v872, %v908
        %v937 = vmul.f32 %v873, %v908
        %v938 = vmul.f32 %v874, %v913
        %v939 = vmul.f32 %v875, %v913
        %v940 = vmul.f32 %v876, %v918
        %v941 = vmul.f32 %v877, %v918
        %v942 = vmul.f32 %v878, %v923
        %v943 = vmul.f32 %v879, %v923
        %v944 = vmul.f32 %v880, %v928
        %v945 = vmul.f32 %v881, %v928
        %v946 = vadd.f32 %v930, %v932
        %v947 = vadd.f32 %v946, %v934
        %v948 = vadd.f32 %v947, %v936
        %v949 = vadd.f32 %v948, %v938
        %v950 = vadd.f32 %v949, %v940
        %v951 = vadd.f32 %v950, %v942
        %v952 = vadd.f32 %v951, %v944
        %v953 = vrot.slane %v952, 4
        %v954 = vadd.f32 %v952, %v953
        %v955 = vrot.slane %v954, 2
        %v956 = vadd.f32 %v954, %v955
        %v957 = vrot.slane %v956, 1
        %v958 = vadd.f32 %v956, %v957
        %v959 = vadd.f32 %v931, %v933
        %v960 = vadd.f32 %v959, %v935
        %v961 = vadd.f32 %v960, %v937
        %v962 = vadd.f32 %v961, %v939
        %v963 = vadd.f32 %v962, %v941
        %v964 = vadd.f32 %v963, %v943
        %v965 = vadd.f32 %v964, %v945
        %v966 = vrot.slane %v965, 4
        %v967 = vadd.f32 %v965, %v966
        %v968 = vrot.slane %v967, 2
        %v969 = vadd.f32 %v967, %v968
        %v970 = vrot.slane %v969, 1
        %v971 = vadd.f32 %v969, %v970
        %v972 = vld [vmem:[#allocation2] sm:$0x1]
        %974 = vset.pattern.permute.xlu0 0
        %975 = vperm.xlu0 %974, %v972
        %v976 = vpop.permute.xlu0 %975
        %v978 = vlaneseq
        %v979 = vshrl.u32 %v978, 7
        %v980 = vsub.s32 0, %v979
        %v981 = vrot.slane %v976, %v980
        %v982 = vadd.f32 %v958, %v981
        %v983 = vadd.f32 %v971, %v981
        %v986 = vcombine.low %v982, %v983
        %v988 = vunpack.c.l.s4 1966171168
        %v989 = vunpack.c.0.s8 %v988
        %v990 = vlaneseq
        %v991 = vshrl.u32 %v990, 7
        %v992 = vsub.s32 %v989, %v991
        %v993 = vrot.slane %v986, %v992
        %v995 = vunpack.c.l.s4 1966171168
        %v996 = vunpack.c.0.s8 %v995
        %v997 = vlaneseq
        %v998 = vshrl.u32 %v997, 7
        %v999 = vsub.s32 %v996, %v998
        %v1000 = vrot.slane %v993, %v999
        %v1002 = vlaneseq
        %vm1003 = vcmp.ge.s32.totalorder %v1002, 0
        %vm1004 = vcmp.lt.s32.totalorder %v1002, 256
        %vm1005 = vmand %vm1003, %vm1004
        %1006 = vst.msk [vmem:[%s327] sm:$0x3] %vm1005, %v1000
        %s1007 = sand.u32 %s227, 1
        %s1008 = scalar_lea.sflag [#allocation4], %s1007
        %s1009 = sand.u32 %s227, 1
        %s1010 = smul.addr %s1009, 2
        %s1011 = scalar_lea.vmem [#allocation3], %s1010
        // Predicated region
        $region57: #{tpu_custom_call.1} parent=55 // pred_check
          %p1012 = pneg %p237
        $region58: #{tpu_custom_call.1} parent=55 // pred_check_branch
          %1014 = sbr.rel (%p1012) target = $region60
        $region59: #{tpu_custom_call.1} parent=55 // pred_region
          %s1016 = ssub.s32 32, 32
          %1017 = vsyncadd %s1008, %s1016
          %s1018 = smul.addr %s25, 2
          %s1019 = smul.addr %s1018, 16
          %s1020 = scalar_lea.hbm %s9, %s1019
          %s1022 = sshll.u32 %s1011, 4
          %s1023 = int_to_ptr.vmem [resolvable:$true] %s1022
          %1025 = dma.vmem_to_hbm [thread:$0]  %s1023, 32, %s1020, %s1008
        $region60: #{tpu_custom_call.1} parent=55 // pred_fallthru
          _
      $region56: #{tpu_custom_call.1} parent=5 // pred_fallthru
        _
      %p1026 = scmp.le.s32.totalorder 2, %s20
      // Predicated region
      $region61: #{tpu_custom_call.1} parent=5 // pred_check
        %p1027 = pneg %p1026
      $region62: #{tpu_custom_call.1} parent=5 // pred_check_branch
        %1029 = sbr.rel (%p1027) target = $region64
      $region63: #{tpu_custom_call.1} parent=5 // pred_region
        %s1030 = ssub.s32 %s20, 2
        // Predicated region
        $region65: #{tpu_custom_call.1} parent=63 // pred_check
          %p1031 = pneg %p243
        $region66: #{tpu_custom_call.1} parent=63 // pred_check_branch
          %1033 = sbr.rel (%p1031) target = $region68
        $region67: #{tpu_custom_call.1} parent=63 // pred_region
          %s1034 = sand.u32 %s228, 1
          %s1035 = scalar_lea.sflag [#allocation4], %s1034
          %s1036 = sand.u32 %s228, 1
          %s1037 = smul.addr %s1036, 2
          %s1038 = scalar_lea.vmem [#allocation3], %s1037
          %1039 = dma.done %s1035, 32
        $region68: #{tpu_custom_call.1} parent=63 // pred_fallthru
          _
      $region64: #{tpu_custom_call.1} parent=5 // pred_fallthru
        _
    $region6: #{tpu_custom_call.1} parent=1 // loop_footer
      %s24 = sadd.s32 1, %s20
    $region7: #{tpu_custom_call.1} parent=1 // loop_footer_branch
      %19 = sbr.rel target = $region3
    $region8: #{tpu_custom_call.1} parent=1 // loop_exit
      _
    %1040 = vsyncpa [#allocation4], 1
    %s1041 = scalar_lea.sflag [#allocation4], 1
    %1042 = vsyncpa %s1041, 1

</llo_original>
